<compile_context>
chip_gen: v6e
topology: v6e:2x2x1
jax: 0.10.0
libtpu: 0.0.40
codegen_flags: <defaults>
</compile_context>

<pallas_src>
import math

import jax
import jax.numpy as jnp
from jax import lax
from jax.experimental import pallas as pl
from jax.experimental.pallas import tpu as pltpu


def _vmem_cap_bytes():
    """Physical-VMEM-aware ceiling for vmem_limit_bytes (leave headroom)."""
    try:
        phys = int(pltpu.get_tpu_info().vmem_capacity_bytes)
    except Exception:
        phys = 64 * 2**20          # conservative: v7x per-TensorCore VMEM
    return min(100 * 2**20, (phys * 3) // 4)   # 48 MiB on v7x, 96 MiB on v5e/v6e


def build_fused_hgcn_kernel(layer_dims, relu_flags, has_masks, mask_offsets,
                            compute_dtype):
    """Kernel computing the full HGCN forward for a fixed layer structure."""
    n_layers = len(layer_dims)
    approx_recip = compute_dtype != jnp.float32

    def one_layer(x_f32, adj_a, adj_b, w_cat_ref, sm_row, dout):
        cdt = adj_a.dtype
        # One fused projection (single MXU pass) replaces six small matmuls:
        #   xw = x @ [w_na | w_gb | awb1^T | w_na@a1^T | awa1^T | awa2^T | awb2^T]
        xw = jnp.dot(x_f32.astype(cdt), w_cat_ref[...],
                     preferred_element_type=jnp.float32)
        x_h    = xw[:, :dout]                         # SparseAttention hidden
        sup_vb = xw[:, dout:2 * dout + 1]             # [x@w_gb | x@awb1^T]
        s_src  = xw[:, 2 * dout + 1:2 * dout + 2]     # a1 . x_h[i] (reassociated)
        v_a    = xw[:, 2 * dout + 2:2 * dout + 3]     # x @ awa1^T
        s_ax   = xw[:, 2 * dout + 3:2 * dout + 4]     # x @ awa2^T
        s_bx   = xw[:, 2 * dout + 4:2 * dout + 5]     # x @ awb2^T

        # packed small params for this layer: [b_gb | a2 | ab_a | ab_b]
        b_gb = sm_row[:, :dout]
        a2   = sm_row[:, dout:2 * dout]
        ab_a = sm_row[:, 2 * dout:2 * dout + 1]
        ab_b = sm_row[:, 2 * dout + 1:2 * dout + 2]

        # One adj_b pass gives both the GraphConvolution output and gate_b's
        # type-sum column (adj_b @ x @ awb1^T == (adj_b @ x) @ awb1^T).
        b_out = jnp.dot(adj_b, sup_vb.astype(cdt),
                        preferred_element_type=jnp.float32)
        x_b     = b_out[:, :dout] + b_gb
        adjb_vb = b_out[:, dout:dout + 1]
        adja_va = jnp.dot(adj_a, v_a.astype(cdt),
                          preferred_element_type=jnp.float32)

        # per-node gates: sigmoid(Linear(cat([adj @ x, x])))
        gate_a = jax.nn.sigmoid(adja_va + s_ax + ab_a)
        gate_b = jax.nn.sigmoid(adjb_vb + s_bx + ab_b)

        # SparseAttention over adj_a (dense masked equivalent; exp path in f32).
        # s_dst is a 1-row matmul: lands directly in (1, N) orientation — no
        # in-kernel transpose needed.
        s_dst = lax.dot_general(a2, x_h, (((1,), (1,)), ((), ())),
                                preferred_element_type=jnp.float32)   # (1, N)
        score = s_src + s_dst                                         # (N, N)
        lrelu = jnp.where(score > 0, score, 0.01 * score)             # LeakyReLU(0.01)
        z = jnp.minimum(-lrelu, 80.0)                                 # f32 exp guard
        e = jnp.where(adj_a != 0, jnp.exp(z), 0.0)                    # exp only at edges
        # torch: denom[i, j] = rowsum[j]  ->  fold it into the rows of x_h
        rowsum = jnp.sum(e, axis=1, keepdims=True)                    # (N, 1)
        inv = pl.reciprocal(rowsum + 1e-5, approx=approx_recip)
        x_a = jnp.dot(e.astype(cdt), (x_h * inv).astype(cdt),
                      preferred_element_type=jnp.float32)

        # combine: sigmoid(gate_a.repeat * x_a + gate_b.repeat * x_b)
        return jax.nn.sigmoid(gate_a * x_a + gate_b * x_b)

    def kernel(*refs):
        adja_ref, adjb_ref, x_ref = refs[0], refs[1], refs[2]
        wcat_refs = refs[3:3 + n_layers]
        small_ref = refs[3 + n_layers]
        pos = 4 + n_layers
        mask_ref = refs[pos] if has_masks else None
        out_ref = refs[pos + 1] if has_masks else refs[pos]

        adj_a = adja_ref[...]
        adj_b = adjb_ref[...]
        sm = small_ref[...]                       # (n_layers, 2*max_dout+2) f32
        x = x_ref[...]
        for i, (_din, dout) in enumerate(layer_dims):
            x = one_layer(x, adj_a, adj_b, wcat_refs[i], sm[i:i + 1, :], dout)
            if i >= 1:                            # torch: relu/dropout on hgcns[1:]
                if relu_flags[i - 1]:
                    x = jnp.maximum(x, 0.0)
                if has_masks:
                    m0 = mask_offsets[i - 1]
                    x = x * mask_ref[:, m0:m0 + dout]   # inverted-dropout mask
        out_ref[...] = x.astype(out_ref.dtype)

    return kernel


# ---------------- host-side parameter packing ----------------

def pack_layer_wcat(p, compute_dtype):
    """(din, 2*dout+5): [w_na | w_gb | awb1^T | w_na@a1^T | awa1^T | awa2^T | awb2^T]."""
    din, dout = p["w_na"].shape
    a1 = p["a_na"][:, :dout]
    s_src_col = jnp.dot(p["w_na"], a1.T, precision=lax.Precision.HIGHEST)  # (din, 1)
    cols = [p["w_na"], p["w_gb"], p["aw_b"][:, :din].T, s_src_col,
            p["aw_a"][:, :din].T, p["aw_a"][:, din:].T, p["aw_b"][:, din:].T]
    return jnp.concatenate(cols, axis=1).astype(compute_dtype)


def pack_layer_small(p, width):
    """(1, width) f32 row: [b_gb | a2 | ab_a | ab_b] (+ zero pad to width)."""
    dout = p["w_na"].shape[1]
    row = jnp.concatenate([p["b_gb"], p["a_na"][:, dout:], p["ab_a"], p["ab_b"]],
                          axis=1).astype(jnp.float32)
    if row.shape[1] < width:
        row = jnp.pad(row, ((0, 0), (0, width - row.shape[1])))
    return row


def hgcn_forward_pallas(x, adj_a, adj_b, params_list, masks, relu_flags,
                        compute_dtype=jnp.bfloat16):
    """Entire HGCN.forward (all layers + relu + dropout masks) in ONE pallas_call."""
    N = x.shape[0]
    n_layers = len(params_list)
    layer_dims = tuple((p["w_na"].shape[0], p["w_na"].shape[1]) for p in params_list)
    dout_final = layer_dims[-1][1]

    # one packed small-param buffer for ALL layers + one w_cat per layer
    small_w = max(2 * d + 2 for _, d in layer_dims)
    small_buf = jnp.concatenate(
        [pack_layer_small(p, small_w) for p in params_list], axis=0)
    wcats = [pack_layer_wcat(p, compute_dtype) for p in params_list]

    args = [adj_a.astype(compute_dtype), adj_b.astype(compute_dtype),
            x.astype(jnp.float32)] + wcats + [small_buf]

    has_masks = len(masks) > 0
    mask_offsets = []
    if has_masks:
        off = 0
        for m in masks:
            mask_offsets.append(off)
            off += m.shape[1]
        args.append(jnp.concatenate(
            [jnp.asarray(m, jnp.float32) for m in masks], axis=1))

    kernel = build_fused_hgcn_kernel(layer_dims, tuple(relu_flags), has_masks,
                                     tuple(mask_offsets), compute_dtype)

    in_specs = [
        pl.BlockSpec(a.shape, lambda *_, n=a.ndim: (0,) * n,
                     memory_space=pltpu.MemorySpace.VMEM)
        for a in args
    ]
    out_spec = pl.BlockSpec((N, dout_final), lambda *_: (0, 0),
                            memory_space=pltpu.MemorySpace.VMEM)

    in_bytes = sum(a.size * a.dtype.itemsize for a in args)
    tmp_bytes = 8 * N * N * 4                 # score / e / f32 activations
    vmem_limit = int(min(_vmem_cap_bytes(),
                         max(32 * 2**20, 2 * (in_bytes + tmp_bytes))))

    return pl.pallas_call(
        kernel,
        out_shape=jax.ShapeDtypeStruct((N, dout_final), jnp.float32),
        in_specs=in_specs,
        out_specs=out_spec,
        compiler_params=pltpu.CompilerParams(vmem_limit_bytes=vmem_limit),
    )(*args)


# ---------------- pure-JAX reference (torch f32 semantics) ----------------

def hgcn_layer_ref(x, adj_a, adj_b, p):
    dout = p["w_gb"].shape[1]
    ts_a = adj_a @ x
    ts_b = adj_b @ x
    gate_a = jax.nn.sigmoid(jnp.concatenate([ts_a, x], 1) @ p["aw_a"].T + p["ab_a"])
    gate_b = jax.nn.sigmoid(jnp.concatenate([ts_b, x], 1) @ p["aw_b"].T + p["ab_b"])
    x_h = x @ p["w_na"]
    a1, a2 = p["a_na"][:, :dout], p["a_na"][:, dout:]
    score = (x_h @ a1.T) + (x_h @ a2.T).T
    lrelu = jnp.where(score > 0, score, 0.01 * score)
    e = jnp.where(adj_a != 0, jnp.exp(-lrelu), 0.0)
    rowsum = e.sum(axis=1)
    attn = e / (rowsum[None, :] + 1e-5)      # column-indexed norm, as in torch code
    x_a = attn @ x_h
    x_b = adj_b @ (x @ p["w_gb"]) + p["b_gb"]
    return jax.nn.sigmoid(gate_a * x_a + gate_b * x_b)


def hgcn_forward_ref(x, adj_a, adj_b, params_list, masks, relu_flags):
    x = hgcn_layer_ref(x, adj_a, adj_b, params_list[0])
    for i in range(1, len(params_list)):
        x = hgcn_layer_ref(x, adj_a, adj_b, params_list[i])
        if relu_flags[i - 1]:
            x = jax.nn.relu(x)
        x = x * masks[i - 1]
    return x


# ---------------- parameter / dropout-mask construction ----------------

def make_dropout_masks_and_flags(key, dropout, N, params_list):
    """Precomputed inverted-dropout masks (shared by kernel and reference)."""
    n_layers = len(params_list)
    masks, relu_flags = [], []
    for enum_idx in range(n_layers - 1):
        relu_flags.append(enum_idx != n_layers - 1)   # mirrors the torch loop test
        key, sub = jax.random.split(key)
        dout_i = params_list[enum_idx + 1]["w_gb"].shape[1]
        if dropout > 0.0:
            keep = jax.random.bernoulli(sub, 1.0 - dropout, (N, dout_i))
            masks.append(jnp.where(keep, 1.0 / (1.0 - dropout), 0.0).astype(jnp.float32))
        else:
            masks.append(jnp.ones((N, dout_i), jnp.float32))
    return masks, relu_flags


def init_layer_params(key, din, dout):
    """Deterministic synthetic init mirroring the module's parameter shapes.
    Only parameters actually used by forward() are materialized
    (gcn_a / mlp_ab / w_a / w_b are dead in HGCNLayer.forward)."""
    ks = jax.random.split(key, 8)
    stdv = 1.0 / math.sqrt(dout)                       # GraphConvolution init
    xav_w = 1.414 * math.sqrt(6.0 / (din + dout))      # xavier_uniform gain=1.414
    xav_a = 1.414 * math.sqrt(6.0 / (1 + 2 * dout))
    lin_b = 1.0 / math.sqrt(2 * din)                   # nn.Linear-style bound
    return {
        "w_gb": jax.random.uniform(ks[0], (din, dout), jnp.float32, -stdv, stdv),
        "b_gb": jax.random.uniform(ks[1], (1, dout), jnp.float32, -stdv, stdv),
        "w_na": jax.random.uniform(ks[2], (din, dout), jnp.float32, -xav_w, xav_w),
        "a_na": jax.random.uniform(ks[3], (1, 2 * dout), jnp.float32, -xav_a, xav_a),
        "aw_a": jax.random.uniform(ks[4], (1, 2 * din), jnp.float32, -lin_b, lin_b),
        "ab_a": jax.random.uniform(ks[5], (1, 1), jnp.float32, -lin_b, lin_b),
        "aw_b": jax.random.uniform(ks[6], (1, 2 * din), jnp.float32, -lin_b, lin_b),
        "ab_b": jax.random.uniform(ks[7], (1, 1), jnp.float32, -lin_b, lin_b),
    }


if __name__ == "__main__":
    key = jax.random.PRNGKey(0)
    N = 16
    hiddens = [32, 32, 32]      # HGCN(hiddens=[32,32,32]) -> 2 HGCNLayers
    dropout = 0.5

    k_x, k_a, k_b, k_p, k_drop = jax.random.split(key, 5)
    x = jax.random.normal(k_x, (N, hiddens[0]), jnp.float32)
    adj_a = (jax.random.uniform(k_a, (N, N)) < 0.3).astype(jnp.float32)
    adj_b = (jax.random.uniform(k_b, (N, N)) < 0.3).astype(jnp.float32)
    adj_a = jnp.maximum(adj_a, jnp.eye(N, dtype=jnp.float32))
    adj_b = jnp.maximum(adj_b, jnp.eye(N, dtype=jnp.float32))

    pkeys = jax.random.split(k_p, len(hiddens) - 1)
    params_list = [init_layer_params(pk, hiddens[i], hiddens[i + 1])
                   for i, pk in enumerate(pkeys)]
    masks, relu_flags = make_dropout_masks_and_flags(k_drop, dropout, N, params_list)

    # Performance configuration: bf16 operands on the big matmuls, f32 accumulate.
    out = hgcn_forward_pallas(x, adj_a, adj_b, params_list, masks, relu_flags,
                              compute_dtype=jnp.bfloat16)
    out = jax.block_until_ready(out)

    with jax.default_matmul_precision("highest"):
        ref = hgcn_forward_ref(x, adj_a, adj_b, params_list, masks, relu_flags)
    ref = jax.block_until_ready(ref)

    assert out.shape == (N, hiddens[-1])

    # Strict check of the kernel algebra (f32 compute mode) against the f32
    # reference.  Tolerance allows for the documented (exact-algebra) matmul
    # reassociations: adj @ (x @ w1^T) and x @ (w_na @ a1^T).
    out_f32 = jax.block_until_ready(
        hgcn_forward_pallas(x, adj_a, adj_b, params_list, masks, relu_flags,
                            compute_dtype=jnp.float32))
    assert jnp.allclose(out_f32, ref, atol=5e-4, rtol=5e-4), \
        float(jnp.max(jnp.abs(out_f32 - ref)))

    # Loose sanity check of the bf16 performance path against the f32 reference.
    assert jnp.allclose(out, ref, atol=1e-1, rtol=1e-1), \
        float(jnp.max(jnp.abs(out - ref)))

    print("KERNEL_OK")
</pallas_src>

<mosaic_0001>
module attributes {stable_mosaic.version = 11 : i64} {
  func.func @kernel(%arg0: memref<16x16xbf16, #tpu.memory_space<vmem>>, %arg1: memref<16x16xbf16, #tpu.memory_space<vmem>>, %arg2: memref<16x32xf32, #tpu.memory_space<vmem>>, %arg3: memref<32x69xbf16, #tpu.memory_space<vmem>>, %arg4: memref<32x69xbf16, #tpu.memory_space<vmem>>, %arg5: memref<2x66xf32, #tpu.memory_space<vmem>>, %arg6: memref<16x32xf32, #tpu.memory_space<vmem>>, %arg7: memref<16x32xf32, #tpu.memory_space<vmem>>) attributes {dimension_semantics = [], scalar_prefetch = 0 : i64, scratch_operands = 0 : i64, tpu.core_type = #tpu.core_type<tc>} {
    %c0 = arith.constant 0 : index
    %c0_0 = arith.constant 0 : index
    %0 = vector.load %arg0[%c0, %c0_0] : memref<16x16xbf16, #tpu.memory_space<vmem>>, vector<16x16xbf16>
    %c0_1 = arith.constant 0 : index
    %c0_2 = arith.constant 0 : index
    %1 = vector.load %arg1[%c0_1, %c0_2] : memref<16x16xbf16, #tpu.memory_space<vmem>>, vector<16x16xbf16>
    %c0_3 = arith.constant 0 : index
    %c0_4 = arith.constant 0 : index
    %2 = vector.load %arg5[%c0_3, %c0_4] : memref<2x66xf32, #tpu.memory_space<vmem>>, vector<2x66xf32>
    %c0_5 = arith.constant 0 : index
    %c0_6 = arith.constant 0 : index
    %3 = vector.load %arg2[%c0_5, %c0_6] : memref<16x32xf32, #tpu.memory_space<vmem>>, vector<16x32xf32>
    %4 = vector.extract_strided_slice %2 {offsets = [0, 0], sizes = [1, 66], strides = [1, 1]} : vector<2x66xf32> to vector<1x66xf32>
    %5 = arith.truncf %3 : vector<16x32xf32> to vector<16x32xbf16>
    %c0_7 = arith.constant 0 : index
    %c0_8 = arith.constant 0 : index
    %6 = vector.load %arg3[%c0_7, %c0_8] : memref<32x69xbf16, #tpu.memory_space<vmem>>, vector<32x69xbf16>
    %cst = arith.constant dense<0.000000e+00> : vector<16x69xf32>
    %7 = tpu.matmul %5, %6, %cst {dimension_numbers = #tpu.dot_dimension_numbers<[1], [0], [0], [1], [0, 0, 1, 1], [], []>} : vector<16x32xbf16>, vector<32x69xbf16>, vector<16x69xf32> -> vector<16x69xf32>
    %8 = vector.extract_strided_slice %7 {offsets = [0, 0], sizes = [16, 32], strides = [1, 1]} : vector<16x69xf32> to vector<16x32xf32>
    %9 = vector.extract_strided_slice %7 {offsets = [0, 32], sizes = [16, 33], strides = [1, 1]} : vector<16x69xf32> to vector<16x33xf32>
    %10 = vector.extract_strided_slice %7 {offsets = [0, 65], sizes = [16, 1], strides = [1, 1]} : vector<16x69xf32> to vector<16x1xf32>
    %11 = vector.extract_strided_slice %7 {offsets = [0, 66], sizes = [16, 1], strides = [1, 1]} : vector<16x69xf32> to vector<16x1xf32>
    %12 = vector.extract_strided_slice %7 {offsets = [0, 67], sizes = [16, 1], strides = [1, 1]} : vector<16x69xf32> to vector<16x1xf32>
    %13 = vector.extract_strided_slice %7 {offsets = [0, 68], sizes = [16, 1], strides = [1, 1]} : vector<16x69xf32> to vector<16x1xf32>
    %14 = vector.extract_strided_slice %4 {offsets = [0, 0], sizes = [1, 32], strides = [1, 1]} : vector<1x66xf32> to vector<1x32xf32>
    %15 = vector.extract_strided_slice %4 {offsets = [0, 32], sizes = [1, 32], strides = [1, 1]} : vector<1x66xf32> to vector<1x32xf32>
    %16 = vector.extract_strided_slice %4 {offsets = [0, 64], sizes = [1, 1], strides = [1, 1]} : vector<1x66xf32> to vector<1x1xf32>
    %17 = vector.extract_strided_slice %4 {offsets = [0, 65], sizes = [1, 1], strides = [1, 1]} : vector<1x66xf32> to vector<1x1xf32>
    %18 = arith.truncf %9 : vector<16x33xf32> to vector<16x33xbf16>
    %cst_9 = arith.constant dense<0.000000e+00> : vector<16x33xf32>
    %19 = tpu.matmul %1, %18, %cst_9 {dimension_numbers = #tpu.dot_dimension_numbers<[1], [0], [0], [1], [0, 0, 1, 1], [], []>} : vector<16x16xbf16>, vector<16x33xbf16>, vector<16x33xf32> -> vector<16x33xf32>
    %20 = vector.extract_strided_slice %19 {offsets = [0, 0], sizes = [16, 32], strides = [1, 1]} : vector<16x33xf32> to vector<16x32xf32>
    %21 = vector.broadcast %14 : vector<1x32xf32> to vector<16x32xf32>
    %22 = arith.addf %20, %21 : vector<16x32xf32>
    %23 = vector.extract_strided_slice %19 {offsets = [0, 32], sizes = [16, 1], strides = [1, 1]} : vector<16x33xf32> to vector<16x1xf32>
    %24 = arith.truncf %11 : vector<16x1xf32> to vector<16x1xbf16>
    %cst_10 = arith.constant dense<0.000000e+00> : vector<16x1xf32>
    %25 = tpu.matmul %0, %24, %cst_10 {dimension_numbers = #tpu.dot_dimension_numbers<[1], [0], [0], [1], [0, 0, 1, 1], [], []>} : vector<16x16xbf16>, vector<16x1xbf16>, vector<16x1xf32> -> vector<16x1xf32>
    %26 = arith.addf %25, %12 : vector<16x1xf32>
    %27 = vector.broadcast %16 : vector<1x1xf32> to vector<16x1xf32>
    %28 = arith.addf %26, %27 : vector<16x1xf32>
    %29 = arith.negf %28 : vector<16x1xf32>
    %30 = math.exp %29 : vector<16x1xf32>
    %cst_11 = arith.constant 1.000000e+00 : f32
    %31 = vector.broadcast %cst_11 : f32 to vector<16x1xf32>
    %32 = arith.addf %31, %30 : vector<16x1xf32>
    %33 = arith.divf %31, %32 : vector<16x1xf32>
    %34 = arith.addf %23, %13 : vector<16x1xf32>
    %35 = vector.broadcast %17 : vector<1x1xf32> to vector<16x1xf32>
    %36 = arith.addf %34, %35 : vector<16x1xf32>
    %37 = arith.negf %36 : vector<16x1xf32>
    %38 = math.exp %37 : vector<16x1xf32>
    %cst_12 = arith.constant 1.000000e+00 : f32
    %39 = vector.broadcast %cst_12 : f32 to vector<16x1xf32>
    %40 = arith.addf %39, %38 : vector<16x1xf32>
    %41 = arith.divf %39, %40 : vector<16x1xf32>
    %cst_13 = arith.constant dense<0.000000e+00> : vector<1x16xf32>
    %42 = tpu.matmul %15, %8, %cst_13 {dimension_numbers = #tpu.dot_dimension_numbers<[1], [1], [0], [0], [0, 0, 1, 0], [], []>} : vector<1x32xf32>, vector<16x32xf32>, vector<1x16xf32> -> vector<1x16xf32>
    %43 = vector.broadcast %10 : vector<16x1xf32> to vector<16x16xf32>
    %44 = vector.broadcast %42 : vector<1x16xf32> to vector<16x16xf32>
    %45 = arith.addf %43, %44 : vector<16x16xf32>
    %cst_14 = arith.constant 0.000000e+00 : f32
    %46 = vector.broadcast %cst_14 : f32 to vector<16x16xf32>
    %47 = arith.cmpf ogt, %45, %46 : vector<16x16xf32>
    %cst_15 = arith.constant 0.00999999977 : f32
    %48 = vector.broadcast %cst_15 : f32 to vector<16x16xf32>
    %49 = arith.mulf %48, %45 : vector<16x16xf32>
    %50 = arith.select %47, %45, %49 : vector<16x16xi1>, vector<16x16xf32>
    %cst_16 = arith.constant 0.000000e+00 : f32
    %51 = vector.broadcast %cst_16 : f32 to vector<16x16xf32>
    %52 = arith.subf %51, %50 : vector<16x16xf32>
    %cst_17 = arith.constant 8.000000e+01 : f32
    %53 = vector.broadcast %cst_17 : f32 to vector<16x16xf32>
    %54 = arith.minimumf %52, %53 : vector<16x16xf32>
    %cst_18 = arith.constant 0.000000e+00 : bf16
    %55 = vector.broadcast %cst_18 : bf16 to vector<16x16xbf16>
    %56 = arith.cmpf one, %0, %55 : vector<16x16xbf16>
    %57 = math.exp %54 : vector<16x16xf32>
    %cst_19 = arith.constant 0.000000e+00 : f32
    %58 = vector.broadcast %cst_19 : f32 to vector<16x16xf32>
    %59 = arith.select %56, %57, %58 : vector<16x16xi1>, vector<16x16xf32>
    %cst_20 = arith.constant dense<0.000000e+00> : vector<16xf32>
    %60 = vector.multi_reduction <add>, %59, %cst_20 [1] : vector<16x16xf32> to vector<16xf32>
    %61 = vector.shape_cast %60 : vector<16xf32> to vector<16x1xf32>
    %cst_21 = arith.constant 9.99999974E-6 : f32
    %62 = vector.broadcast %cst_21 : f32 to vector<16x1xf32>
    %63 = arith.addf %61, %62 : vector<16x1xf32>
    %64 = tpu.reciprocal %63 {approx = true} : vector<16x1xf32> -> vector<16x1xf32>
    %65 = arith.truncf %59 : vector<16x16xf32> to vector<16x16xbf16>
    %66 = vector.broadcast %64 : vector<16x1xf32> to vector<16x32xf32>
    %67 = arith.mulf %8, %66 : vector<16x32xf32>
    %68 = arith.truncf %67 : vector<16x32xf32> to vector<16x32xbf16>
    %cst_22 = arith.constant dense<0.000000e+00> : vector<16x32xf32>
    %69 = tpu.matmul %65, %68, %cst_22 {dimension_numbers = #tpu.dot_dimension_numbers<[1], [0], [0], [1], [0, 0, 1, 1], [], []>} : vector<16x16xbf16>, vector<16x32xbf16>, vector<16x32xf32> -> vector<16x32xf32>
    %70 = vector.broadcast %33 : vector<16x1xf32> to vector<16x32xf32>
    %71 = arith.mulf %70, %69 : vector<16x32xf32>
    %72 = vector.broadcast %41 : vector<16x1xf32> to vector<16x32xf32>
    %73 = arith.mulf %72, %22 : vector<16x32xf32>
    %74 = arith.addf %71, %73 : vector<16x32xf32>
    %75 = arith.negf %74 : vector<16x32xf32>
    %76 = math.exp %75 : vector<16x32xf32>
    %cst_23 = arith.constant 1.000000e+00 : f32
    %77 = vector.broadcast %cst_23 : f32 to vector<16x32xf32>
    %78 = arith.addf %77, %76 : vector<16x32xf32>
    %79 = arith.divf %77, %78 : vector<16x32xf32>
    %80 = vector.extract_strided_slice %2 {offsets = [1, 0], sizes = [1, 66], strides = [1, 1]} : vector<2x66xf32> to vector<1x66xf32>
    %81 = arith.truncf %79 : vector<16x32xf32> to vector<16x32xbf16>
    %c0_24 = arith.constant 0 : index
    %c0_25 = arith.constant 0 : index
    %82 = vector.load %arg4[%c0_24, %c0_25] : memref<32x69xbf16, #tpu.memory_space<vmem>>, vector<32x69xbf16>
    %cst_26 = arith.constant dense<0.000000e+00> : vector<16x69xf32>
    %83 = tpu.matmul %81, %82, %cst_26 {dimension_numbers = #tpu.dot_dimension_numbers<[1], [0], [0], [1], [0, 0, 1, 1], [], []>} : vector<16x32xbf16>, vector<32x69xbf16>, vector<16x69xf32> -> vector<16x69xf32>
    %84 = vector.extract_strided_slice %83 {offsets = [0, 0], sizes = [16, 32], strides = [1, 1]} : vector<16x69xf32> to vector<16x32xf32>
    %85 = vector.extract_strided_slice %83 {offsets = [0, 32], sizes = [16, 33], strides = [1, 1]} : vector<16x69xf32> to vector<16x33xf32>
    %86 = vector.extract_strided_slice %83 {offsets = [0, 65], sizes = [16, 1], strides = [1, 1]} : vector<16x69xf32> to vector<16x1xf32>
    %87 = vector.extract_strided_slice %83 {offsets = [0, 66], sizes = [16, 1], strides = [1, 1]} : vector<16x69xf32> to vector<16x1xf32>
    %88 = vector.extract_strided_slice %83 {offsets = [0, 67], sizes = [16, 1], strides = [1, 1]} : vector<16x69xf32> to vector<16x1xf32>
    %89 = vector.extract_strided_slice %83 {offsets = [0, 68], sizes = [16, 1], strides = [1, 1]} : vector<16x69xf32> to vector<16x1xf32>
    %90 = vector.extract_strided_slice %80 {offsets = [0, 0], sizes = [1, 32], strides = [1, 1]} : vector<1x66xf32> to vector<1x32xf32>
    %91 = vector.extract_strided_slice %80 {offsets = [0, 32], sizes = [1, 32], strides = [1, 1]} : vector<1x66xf32> to vector<1x32xf32>
    %92 = vector.extract_strided_slice %80 {offsets = [0, 64], sizes = [1, 1], strides = [1, 1]} : vector<1x66xf32> to vector<1x1xf32>
    %93 = vector.extract_strided_slice %80 {offsets = [0, 65], sizes = [1, 1], strides = [1, 1]} : vector<1x66xf32> to vector<1x1xf32>
    %94 = arith.truncf %85 : vector<16x33xf32> to vector<16x33xbf16>
    %cst_27 = arith.constant dense<0.000000e+00> : vector<16x33xf32>
    %95 = tpu.matmul %1, %94, %cst_27 {dimension_numbers = #tpu.dot_dimension_numbers<[1], [0], [0], [1], [0, 0, 1, 1], [], []>} : vector<16x16xbf16>, vector<16x33xbf16>, vector<16x33xf32> -> vector<16x33xf32>
    %96 = vector.extract_strided_slice %95 {offsets = [0, 0], sizes = [16, 32], strides = [1, 1]} : vector<16x33xf32> to vector<16x32xf32>
    %97 = vector.broadcast %90 : vector<1x32xf32> to vector<16x32xf32>
    %98 = arith.addf %96, %97 : vector<16x32xf32>
    %99 = vector.extract_strided_slice %95 {offsets = [0, 32], sizes = [16, 1], strides = [1, 1]} : vector<16x33xf32> to vector<16x1xf32>
    %100 = arith.truncf %87 : vector<16x1xf32> to vector<16x1xbf16>
    %cst_28 = arith.constant dense<0.000000e+00> : vector<16x1xf32>
    %101 = tpu.matmul %0, %100, %cst_28 {dimension_numbers = #tpu.dot_dimension_numbers<[1], [0], [0], [1], [0, 0, 1, 1], [], []>} : vector<16x16xbf16>, vector<16x1xbf16>, vector<16x1xf32> -> vector<16x1xf32>
    %102 = arith.addf %101, %88 : vector<16x1xf32>
    %103 = vector.broadcast %92 : vector<1x1xf32> to vector<16x1xf32>
    %104 = arith.addf %102, %103 : vector<16x1xf32>
    %105 = arith.negf %104 : vector<16x1xf32>
    %106 = math.exp %105 : vector<16x1xf32>
    %cst_29 = arith.constant 1.000000e+00 : f32
    %107 = vector.broadcast %cst_29 : f32 to vector<16x1xf32>
    %108 = arith.addf %107, %106 : vector<16x1xf32>
    %109 = arith.divf %107, %108 : vector<16x1xf32>
    %110 = arith.addf %99, %89 : vector<16x1xf32>
    %111 = vector.broadcast %93 : vector<1x1xf32> to vector<16x1xf32>
    %112 = arith.addf %110, %111 : vector<16x1xf32>
    %113 = arith.negf %112 : vector<16x1xf32>
    %114 = math.exp %113 : vector<16x1xf32>
    %cst_30 = arith.constant 1.000000e+00 : f32
    %115 = vector.broadcast %cst_30 : f32 to vector<16x1xf32>
    %116 = arith.addf %115, %114 : vector<16x1xf32>
    %117 = arith.divf %115, %116 : vector<16x1xf32>
    %cst_31 = arith.constant dense<0.000000e+00> : vector<1x16xf32>
    %118 = tpu.matmul %91, %84, %cst_31 {dimension_numbers = #tpu.dot_dimension_numbers<[1], [1], [0], [0], [0, 0, 1, 0], [], []>} : vector<1x32xf32>, vector<16x32xf32>, vector<1x16xf32> -> vector<1x16xf32>
    %119 = vector.broadcast %86 : vector<16x1xf32> to vector<16x16xf32>
    %120 = vector.broadcast %118 : vector<1x16xf32> to vector<16x16xf32>
    %121 = arith.addf %119, %120 : vector<16x16xf32>
    %cst_32 = arith.constant 0.000000e+00 : f32
    %122 = vector.broadcast %cst_32 : f32 to vector<16x16xf32>
    %123 = arith.cmpf ogt, %121, %122 : vector<16x16xf32>
    %cst_33 = arith.constant 0.00999999977 : f32
    %124 = vector.broadcast %cst_33 : f32 to vector<16x16xf32>
    %125 = arith.mulf %124, %121 : vector<16x16xf32>
    %126 = arith.select %123, %121, %125 : vector<16x16xi1>, vector<16x16xf32>
    %cst_34 = arith.constant 0.000000e+00 : f32
    %127 = vector.broadcast %cst_34 : f32 to vector<16x16xf32>
    %128 = arith.subf %127, %126 : vector<16x16xf32>
    %cst_35 = arith.constant 8.000000e+01 : f32
    %129 = vector.broadcast %cst_35 : f32 to vector<16x16xf32>
    %130 = arith.minimumf %128, %129 : vector<16x16xf32>
    %cst_36 = arith.constant 0.000000e+00 : bf16
    %131 = vector.broadcast %cst_36 : bf16 to vector<16x16xbf16>
    %132 = arith.cmpf one, %0, %131 : vector<16x16xbf16>
    %133 = math.exp %130 : vector<16x16xf32>
    %cst_37 = arith.constant 0.000000e+00 : f32
    %134 = vector.broadcast %cst_37 : f32 to vector<16x16xf32>
    %135 = arith.select %132, %133, %134 : vector<16x16xi1>, vector<16x16xf32>
    %cst_38 = arith.constant dense<0.000000e+00> : vector<16xf32>
    %136 = vector.multi_reduction <add>, %135, %cst_38 [1] : vector<16x16xf32> to vector<16xf32>
    %137 = vector.shape_cast %136 : vector<16xf32> to vector<16x1xf32>
    %cst_39 = arith.constant 9.99999974E-6 : f32
    %138 = vector.broadcast %cst_39 : f32 to vector<16x1xf32>
    %139 = arith.addf %137, %138 : vector<16x1xf32>
    %140 = tpu.reciprocal %139 {approx = true} : vector<16x1xf32> -> vector<16x1xf32>
    %141 = arith.truncf %135 : vector<16x16xf32> to vector<16x16xbf16>
    %142 = vector.broadcast %140 : vector<16x1xf32> to vector<16x32xf32>
    %143 = arith.mulf %84, %142 : vector<16x32xf32>
    %144 = arith.truncf %143 : vector<16x32xf32> to vector<16x32xbf16>
    %cst_40 = arith.constant dense<0.000000e+00> : vector<16x32xf32>
    %145 = tpu.matmul %141, %144, %cst_40 {dimension_numbers = #tpu.dot_dimension_numbers<[1], [0], [0], [1], [0, 0, 1, 1], [], []>} : vector<16x16xbf16>, vector<16x32xbf16>, vector<16x32xf32> -> vector<16x32xf32>
    %146 = vector.broadcast %109 : vector<16x1xf32> to vector<16x32xf32>
    %147 = arith.mulf %146, %145 : vector<16x32xf32>
    %148 = vector.broadcast %117 : vector<16x1xf32> to vector<16x32xf32>
    %149 = arith.mulf %148, %98 : vector<16x32xf32>
    %150 = arith.addf %147, %149 : vector<16x32xf32>
    %151 = arith.negf %150 : vector<16x32xf32>
    %152 = math.exp %151 : vector<16x32xf32>
    %cst_41 = arith.constant 1.000000e+00 : f32
    %153 = vector.broadcast %cst_41 : f32 to vector<16x32xf32>
    %154 = arith.addf %153, %152 : vector<16x32xf32>
    %155 = arith.divf %153, %154 : vector<16x32xf32>
    %cst_42 = arith.constant 0.000000e+00 : f32
    %156 = vector.broadcast %cst_42 : f32 to vector<16x32xf32>
    %157 = arith.maximumf %155, %156 : vector<16x32xf32>
    %c0_43 = arith.constant 0 : index
    %c0_44 = arith.constant 0 : index
    %158 = vector.load %arg6[%c0_43, %c0_44] : memref<16x32xf32, #tpu.memory_space<vmem>>, vector<16x32xf32>
    %159 = arith.mulf %157, %158 : vector<16x32xf32>
    %c0_45 = arith.constant 0 : index
    %c0_46 = arith.constant 0 : index
    %160 = vector.load %arg7[%c0_45, %c0_46] : memref<16x32xf32, #tpu.memory_space<vmem>>, vector<16x32xf32>
    tpu.vector_store %arg7[%c0_45, %c0_46], %159 {strides = array<i32>} : memref<16x32xf32, #tpu.memory_space<vmem>>, vector<16x32xf32>,
    return
  }
}

</mosaic_0001>

<llo_original>
// kernel: tpu_custom_call.1
$region0: #{tpu_custom_call.1}
  #allocation0 [shape = 'u32[]', space=smem, size = 0x4, offset = 0x4, fixed_abs, tag = 'smem constant byte address 0x4 - core index']
  #allocation1 [shape = 'u32[144,128]{1,0:T(1,128)}', space=vmem, size = 0x12000, scoped, tag = 'internal scratch']
  %s0 = inlined_call_operand.hbm [shape: bf16[16,16], index: 0, kind: input, shape index: {}]
  %s1 = inlined_call_operand.hbm [shape: bf16[16,16], index: 1, kind: input, shape index: {}]
  %s2 = inlined_call_operand.hbm [shape: f32[16,32], index: 2, kind: input, shape index: {}]
  %s3 = inlined_call_operand.hbm [shape: bf16[32,69], index: 3, kind: input, shape index: {}]
  %s4 = inlined_call_operand.hbm [shape: bf16[32,69], index: 4, kind: input, shape index: {}]
  %s5 = inlined_call_operand.vmem [shape: f32[2,66], index: 5, kind: input, shape index: {}]
  %s6 = inlined_call_operand.hbm [shape: f32[16,32], index: 6, kind: input, shape index: {}]
  %s7 = inlined_call_operand.hbm [shape: f32[16,32], index: 7, kind: output, shape index: {}]
  %s8 = sld [smem:[#allocation0]]
  $region62: #{tpu_custom_call.1} parent=0
    _
  %s10 = ssub.s32 1, %s8
  %s11 = scalar_select 0, %s10, %s8
  $region1: #{tpu_custom_call.1} parent=0
    #allocation2 [shape = 'u8[4096]{0}', space=vmem, size = 0x1000, scoped, tag = 'input window, operand 0, single buffered']
    #allocation3 [shape = 's32[1]{0}', space=sflag, size = 0x4, scoped, tag = 'scoped memory for tpu_custom_call.1']
    #allocation4 [shape = 's32[1]{0}', space=sflag, size = 0x4, scoped, tag = 'scoped memory for tpu_custom_call.1']
    #allocation5 [shape = 'u8[4096]{0}', space=vmem, size = 0x1000, scoped, tag = 'input window, operand 1, single buffered']
    #allocation6 [shape = 's32[1]{0}', space=sflag, size = 0x4, scoped, tag = 'scoped memory for tpu_custom_call.1']
    #allocation7 [shape = 'u8[8192]{0}', space=vmem, size = 0x2000, scoped, tag = 'input window, operand 2, single buffered']
    #allocation8 [shape = 'u8[8192]{0}', space=vmem, size = 0x2000, scoped, tag = 'input window, operand 3, single buffered']
    #allocation9 [shape = 's32[1]{0}', space=sflag, size = 0x4, scoped, tag = 'scoped memory for tpu_custom_call.1']
    #allocation10 [shape = 'u8[8192]{0}', space=vmem, size = 0x2000, scoped, tag = 'input window, operand 4, single buffered']
    #allocation11 [shape = 'u8[8192]{0}', space=vmem, size = 0x2000, scoped, tag = 'input window, operand 6, single buffered']
    #allocation12 [shape = 's32[1]{0}', space=sflag, size = 0x4, scoped, tag = 'scoped memory for tpu_custom_call.1']
    #allocation13 [shape = 'u8[8192]{0}', space=vmem, size = 0x2000, scoped, tag = 'output window, operand 0, single buffered']
    %12 = vsyncpa [#allocation3], 0
    %13 = vsyncpa [#allocation6], 0
    %14 = vsyncpa [#allocation9], 0
    %15 = vsyncpa [#allocation12], 0
    %16 = vsyncpa [#allocation4], 0
    // Predicated region
    $region2: #{tpu_custom_call.1} parent=1 // pred_check
      _
    $region3: #{tpu_custom_call.1} parent=1 // pred_check_branch
      %18 = sbr.rel (0) target = $region5
    $region4: #{tpu_custom_call.1} parent=1 // pred_region
      %s20 = ssub.s32 128, 128
      %21 = vsyncadd [#allocation3], %s20
      %s22 = sshll.u32 [#allocation2], 4
      %s23 = int_to_ptr.vmem [resolvable:$true] %s22
      %28 = dma.hbm_to_vmem [thread:$0]  %s0, 128, %s23, [#allocation3], 64, 64, 4
    $region5: #{tpu_custom_call.1} parent=1 // pred_fallthru
      _
    // Predicated region
    $region6: #{tpu_custom_call.1} parent=1 // pred_check
      _
    $region7: #{tpu_custom_call.1} parent=1 // pred_check_branch
      %30 = sbr.rel (0) target = $region9
    $region8: #{tpu_custom_call.1} parent=1 // pred_region
      %s32 = ssub.s32 128, 128
      %33 = vsyncadd [#allocation6], %s32
      %s34 = sshll.u32 [#allocation5], 4
      %s35 = int_to_ptr.vmem [resolvable:$true] %s34
      %40 = dma.hbm_to_vmem [thread:$0]  %s1, 128, %s35, [#allocation6], 64, 64, 4
    $region9: #{tpu_custom_call.1} parent=1 // pred_fallthru
      _
    // Predicated region
    $region10: #{tpu_custom_call.1} parent=1 // pred_check
      _
    $region11: #{tpu_custom_call.1} parent=1 // pred_check_branch
      %42 = sbr.rel (0) target = $region13
    $region12: #{tpu_custom_call.1} parent=1 // pred_region
      %s44 = ssub.s32 256, 256
      %45 = vsyncadd [#allocation6], %s44
      %s46 = sshll.u32 [#allocation7], 4
      %s47 = int_to_ptr.vmem [resolvable:$true] %s46
      %52 = dma.hbm_to_vmem [thread:$0]  %s2, 256, %s47, [#allocation6], 128, 128, 8
    $region13: #{tpu_custom_call.1} parent=1 // pred_fallthru
      _
    // Predicated region
    $region14: #{tpu_custom_call.1} parent=1 // pred_check
      _
    $region15: #{tpu_custom_call.1} parent=1 // pred_check_branch
      %54 = sbr.rel (0) target = $region17
    $region16: #{tpu_custom_call.1} parent=1 // pred_region
      %s56 = ssub.s32 256, 256
      %57 = vsyncadd [#allocation9], %s56
      %s58 = sshll.u32 [#allocation8], 4
      %s59 = int_to_ptr.vmem [resolvable:$true] %s58
      %64 = dma.hbm_to_vmem [thread:$0]  %s3, 256, %s59, [#allocation9], 64, 64, 4
    $region17: #{tpu_custom_call.1} parent=1 // pred_fallthru
      _
    // Predicated region
    $region18: #{tpu_custom_call.1} parent=1 // pred_check
      _
    $region19: #{tpu_custom_call.1} parent=1 // pred_check_branch
      %66 = sbr.rel (0) target = $region21
    $region20: #{tpu_custom_call.1} parent=1 // pred_region
      %s68 = ssub.s32 256, 256
      %69 = vsyncadd [#allocation9], %s68
      %s70 = sshll.u32 [#allocation10], 4
      %s71 = int_to_ptr.vmem [resolvable:$true] %s70
      %76 = dma.hbm_to_vmem [thread:$0]  %s4, 256, %s71, [#allocation9], 64, 64, 4
    $region21: #{tpu_custom_call.1} parent=1 // pred_fallthru
      _
    // Predicated region
    $region22: #{tpu_custom_call.1} parent=1 // pred_check
      _
    $region23: #{tpu_custom_call.1} parent=1 // pred_check_branch
      %78 = sbr.rel (0) target = $region25
    $region24: #{tpu_custom_call.1} parent=1 // pred_region
      _
    $region25: #{tpu_custom_call.1} parent=1 // pred_fallthru
      _
    // Predicated region
    $region26: #{tpu_custom_call.1} parent=1 // pred_check
      _
    $region27: #{tpu_custom_call.1} parent=1 // pred_check_branch
      %80 = sbr.rel (0) target = $region29
    $region28: #{tpu_custom_call.1} parent=1 // pred_region
      %s82 = ssub.s32 256, 256
      %83 = vsyncadd [#allocation12], %s82
      %s84 = sshll.u32 [#allocation11], 4
      %s85 = int_to_ptr.vmem [resolvable:$true] %s84
      %90 = dma.hbm_to_vmem [thread:$0]  %s6, 256, %s85, [#allocation12], 128, 128, 8
    $region29: #{tpu_custom_call.1} parent=1 // pred_fallthru
      _
    // Predicated region
    $region30: #{tpu_custom_call.1} parent=1 // pred_check
      _
    $region31: #{tpu_custom_call.1} parent=1 // pred_check_branch
      %92 = sbr.rel (0) target = $region33
    $region32: #{tpu_custom_call.1} parent=1 // pred_region
      %93 = dma.done [#allocation3], 128
    $region33: #{tpu_custom_call.1} parent=1 // pred_fallthru
      _
    // Predicated region
    $region34: #{tpu_custom_call.1} parent=1 // pred_check
      _
    $region35: #{tpu_custom_call.1} parent=1 // pred_check_branch
      %95 = sbr.rel (0) target = $region37
    $region36: #{tpu_custom_call.1} parent=1 // pred_region
      %96 = dma.done [#allocation6], 128
    $region37: #{tpu_custom_call.1} parent=1 // pred_fallthru
      _
    // Predicated region
    $region38: #{tpu_custom_call.1} parent=1 // pred_check
      _
    $region39: #{tpu_custom_call.1} parent=1 // pred_check_branch
      %98 = sbr.rel (0) target = $region41
    $region40: #{tpu_custom_call.1} parent=1 // pred_region
      %99 = dma.done [#allocation6], 256
    $region41: #{tpu_custom_call.1} parent=1 // pred_fallthru
      _
    // Predicated region
    $region42: #{tpu_custom_call.1} parent=1 // pred_check
      _
    $region43: #{tpu_custom_call.1} parent=1 // pred_check_branch
      %101 = sbr.rel (0) target = $region45
    $region44: #{tpu_custom_call.1} parent=1 // pred_region
      %102 = dma.done [#allocation9], 256
    $region45: #{tpu_custom_call.1} parent=1 // pred_fallthru
      _
    // Predicated region
    $region46: #{tpu_custom_call.1} parent=1 // pred_check
      _
    $region47: #{tpu_custom_call.1} parent=1 // pred_check_branch
      %104 = sbr.rel (0) target = $region49
    $region48: #{tpu_custom_call.1} parent=1 // pred_region
      %105 = dma.done [#allocation9], 256
    $region49: #{tpu_custom_call.1} parent=1 // pred_fallthru
      _
    // Predicated region
    $region50: #{tpu_custom_call.1} parent=1 // pred_check
      _
    $region51: #{tpu_custom_call.1} parent=1 // pred_check_branch
      %107 = sbr.rel (0) target = $region53
    $region52: #{tpu_custom_call.1} parent=1 // pred_region
      %108 = dma.done [#allocation12], 256
    $region53: #{tpu_custom_call.1} parent=1 // pred_fallthru
      _
    %v112 = vld [vmem:[#allocation2] sm:$0xf]
    %v113 = vld [vmem:[#allocation2 + $0x4] sm:$0xf]
    %v114 = vld [vmem:[#allocation5] sm:$0xf]
    %v115 = vld [vmem:[#allocation5 + $0x4] sm:$0xf]
    %v116 = vld [vmem:[%s5] sm:$0x3]
    %v117 = vld [vmem:[#allocation7] sm:$0xff]
    %v118 = vld [vmem:[#allocation7 + $0x8] sm:$0xff]
    %v119 = vpack.c.bf16 %v118, %v117
    %v120 = vld [vmem:[#allocation8] sm:$0xf]
    %v121 = vld [vmem:[#allocation8 + $0x4] sm:$0xf]
    %v122 = vld [vmem:[#allocation8 + $0x8] sm:$0xf]
    %v123 = vld [vmem:[#allocation8 + $0xc] sm:$0xf]
    %v128 = vunpack.c.l.b16 %v120
    %v129 = vunpack.c.l.b16 %v121
    %v130 = vunpack.c.l.b16 %v122
    %v131 = vunpack.c.l.b16 %v123
    %v132 = vpack.c.b16 %v129, %v128
    %v133 = vpack.c.b16 %v131, %v130
    %vm136 = vcmask 261120
    %v138 = vsel %vm136, %v119, 0
    %140 = vmatprep.subr.bf16.mxu0 0
    %141 = vmatpush1.bf16.msra.mxu0 0
    %142 = vmatprep.subr.bf16.mxu0 0
    %143 = vmatpush1.bf16.msra.mxu0 0
    %144 = vmatprep.subr.bf16.mxu0 0
    %145 = vmatpush1.bf16.msra.mxu0 0
    %146 = vmatprep.subr.bf16.mxu0 0
    %147 = vmatpush1.bf16.msra.mxu0 0
    %148 = vmatprep.subr.bf16.mxu0 0
    %149 = vmatpush1.bf16.msra.mxu0 0
    %150 = vmatprep.subr.bf16.mxu0 0
    %151 = vmatpush1.bf16.msra.mxu0 0
    %152 = vmatprep.subr.bf16.mxu0 0
    %153 = vmatpush1.bf16.msra.mxu0 %v133
    %154 = vmatprep.subr.bf16.mxu0 0
    %155 = vmatpush1.bf16.msra.mxu0 %v132
    %156 = vmatprep.subr.bf16.mxu0 0
    %157 = vmatpush2.bf16.msra.mxu0 0
    %158 = vmatprep.subr.bf16.mxu0 0
    %159 = vmatpush2.bf16.msra.mxu0 0
    %160 = vmatprep.subr.bf16.mxu0 0
    %161 = vmatpush2.bf16.msra.mxu0 0
    %162 = vmatprep.subr.bf16.mxu0 0
    %163 = vmatpush2.bf16.msra.mxu0 0
    %164 = vmatprep.subr.bf16.mxu0 0
    %165 = vmatpush2.bf16.msra.mxu0 0
    %166 = vmatprep.subr.bf16.mxu0 0
    %167 = vmatpush2.bf16.msra.mxu0 0
    %168 = vmatprep.subr.bf16.mxu0 0
    %169 = vmatpush2.bf16.msra.mxu0 0
    %170 = vmatprep.subr.bf16.mxu0 0
    %171 = vmatpush2.bf16.msra.mxu0 0
    %172 = vmatprep.mubr.bf16.mxu0 0
    %173 = vmatmul.mubr.bf16.gmra.mxu0 %v138
    %v174 = vpop.f32.mrf.mxu0
    %v175 = vadd.f32 0.0, %v174
    %v176 = vpop.f32.mrf.mxu0
    %v177 = vpop.f32.mrf.mxu0
    %v178 = vadd.f32 0.0, %v177
    %v179 = vpop.f32.mrf.mxu0
    %180 = vdwg.mxu0
    %v181 = vpack.c.bf16 %v178, %v175
    %v184 = vunpack.c.l.b16 %v114
    %v185 = vunpack.c.l.b16 %v115
    %v186 = vpack.c.b16 %v185, %v184
    %188 = vrot.lane.b32.xlu0 %v181, 96
    %v189 = vpop.permute.xlu0 %188
    %vm191 = vcmask 130048
    %v193 = vsel %vm191, %v186, 0
    %195 = vmatprep.subr.bf16.mxu0 0
    %196 = vmatpush1.bf16.msra.mxu0 0
    %197 = vmatprep.subr.bf16.mxu0 0
    %198 = vmatpush1.bf16.msra.mxu0 0
    %199 = vmatprep.subr.bf16.mxu0 0
    %200 = vmatpush1.bf16.msra.mxu0 0
    %201 = vmatprep.subr.bf16.mxu0 0
    %202 = vmatpush1.bf16.msra.mxu0 0
    %203 = vmatprep.subr.bf16.mxu0 0
    %204 = vmatpush1.bf16.msra.mxu0 0
    %205 = vmatprep.subr.bf16.mxu0 0
    %206 = vmatpush1.bf16.msra.mxu0 0
    %207 = vmatprep.subr.bf16.mxu0 0
    %208 = vmatpush1.bf16.msra.mxu0 0
    %209 = vmatprep.subr.bf16.mxu0 0
    %210 = vmatpush1.bf16.msra.mxu0 %v189
    %211 = vmatprep.subr.bf16.mxu0 0
    %212 = vmatpush2.bf16.msra.mxu0 0
    %213 = vmatprep.subr.bf16.mxu0 0
    %214 = vmatpush2.bf16.msra.mxu0 0
    %215 = vmatprep.subr.bf16.mxu0 0
    %216 = vmatpush2.bf16.msra.mxu0 0
    %217 = vmatprep.subr.bf16.mxu0 0
    %218 = vmatpush2.bf16.msra.mxu0 0
    %219 = vmatprep.subr.bf16.mxu0 0
    %220 = vmatpush2.bf16.msra.mxu0 0
    %221 = vmatprep.subr.bf16.mxu0 0
    %222 = vmatpush2.bf16.msra.mxu0 0
    %223 = vmatprep.subr.bf16.mxu0 0
    %224 = vmatpush2.bf16.msra.mxu0 0
    %225 = vmatprep.subr.bf16.mxu0 0
    %226 = vmatpush2.bf16.msra.mxu0 0
    %227 = vmatprep.mubr.bf16.mxu0 0
    %228 = vmatmul.mubr.bf16.gmra.mxu0 %v193
    %v229 = vpop.f32.mrf.mxu0
    %v230 = vadd.f32 0.0, %v229
    %v231 = vpop.f32.mrf.mxu0
    %v232 = vpop.f32.mrf.mxu0
    %v233 = vadd.f32 0.0, %v232
    %v234 = vpop.f32.mrf.mxu0
    %235 = vdwg.mxu0
    %v236 = vlaneseq
    %v237 = vshrl.u32 %v236, 7
    %v238 = vsub.s32 0, %v237
    %v239 = vrot.slane %v116, %v238
    %v240 = vadd.f32 %v230, %v239
    %v241 = vadd.f32 %v233, %v239
    %v244 = vunpack.c.l.b16 %v112
    %v245 = vunpack.c.l.b16 %v113
    %v246 = vpack.c.b16 %v245, %v244
    %247 = vrot.lane.b32.xlu0 %v181, 62
    %v248 = vpop.permute.xlu0 %247
    %252 = vrot.lane.b32.xlu0 %v175, 61
    %v253 = vpop.permute.xlu0 %252
    %254 = vrot.lane.b32.xlu0 %v178, 61
    %v255 = vpop.permute.xlu0 %254
    %v259 = vsel %vm191, %v246, 0
    %261 = vmatprep.subr.bf16.mxu0 0
    %262 = vmatpush1.bf16.msra.mxu0 0
    %263 = vmatprep.subr.bf16.mxu0 0
    %264 = vmatpush1.bf16.msra.mxu0 0
    %265 = vmatprep.subr.bf16.mxu0 0
    %266 = vmatpush1.bf16.msra.mxu0 0
    %267 = vmatprep.subr.bf16.mxu0 0
    %268 = vmatpush1.bf16.msra.mxu0 0
    %269 = vmatprep.subr.bf16.mxu0 0
    %270 = vmatpush1.bf16.msra.mxu0 0
    %271 = vmatprep.subr.bf16.mxu0 0
    %272 = vmatpush1.bf16.msra.mxu0 0
    %273 = vmatprep.subr.bf16.mxu0 0
    %274 = vmatpush1.bf16.msra.mxu0 0
    %275 = vmatprep.subr.bf16.mxu0 0
    %276 = vmatpush1.bf16.msra.mxu0 %v248
    %277 = vmatprep.subr.bf16.mxu0 0
    %278 = vmatpush2.bf16.msra.mxu0 0
    %279 = vmatprep.subr.bf16.mxu0 0
    %280 = vmatpush2.bf16.msra.mxu0 0
    %281 = vmatprep.subr.bf16.mxu0 0
    %282 = vmatpush2.bf16.msra.mxu0 0
    %283 = vmatprep.subr.bf16.mxu0 0
    %284 = vmatpush2.bf16.msra.mxu0 0
    %285 = vmatprep.subr.bf16.mxu0 0
    %286 = vmatpush2.bf16.msra.mxu0 0
    %287 = vmatprep.subr.bf16.mxu0 0
    %288 = vmatpush2.bf16.msra.mxu0 0
    %289 = vmatprep.subr.bf16.mxu0 0
    %290 = vmatpush2.bf16.msra.mxu0 0
    %291 = vmatprep.subr.bf16.mxu0 0
    %292 = vmatpush2.bf16.msra.mxu0 0
    %293 = vmatprep.mubr.bf16.mxu0 0
    %294 = vmatmul.mubr.bf16.gmra.mxu0 %v259
    %v295 = vpop.f32.mrf.mxu0
    %v296 = vadd.f32 %v253, %v295
    %v297 = vpop.f32.mrf.mxu0
    %v298 = vpop.f32.mrf.mxu0
    %v299 = vadd.f32 %v255, %v298
    %v300 = vpop.f32.mrf.mxu0
    %301 = vdwg.mxu0
    %303 = vrot.lane.b32.xlu0 %v239, 64
    %v304 = vpop.permute.xlu0 %303
    %v306 = vadd.f32 %v296, %v304
    %v307 = vadd.f32 %v299, %v304
    %v308 = vxor.u32 %v306, 2147483648
    %v309 = vxor.u32 %v307, 2147483648
    %v310 = vmul.f32 %v308, 1.442695
    %v311 = vpow.pop %v310
    %v312 = vmul.f32 %v309, 1.442695
    %v313 = vpow.pop %v312
    %v314 = vadd.f32 %v311, 1.0
    %v315 = vadd.f32 %v313, 1.0
    %v316 = vrcp.pop %v314
    %v317 = vmul.f32 1.0, %v316
    %v318 = vrcp.pop %v315
    %v319 = vmul.f32 1.0, %v318
    %320 = vrot.lane.b32.xlu0 %v175, 92
    %v321 = vpop.permute.xlu0 %320
    %322 = vrot.lane.b32.xlu0 %v178, 92
    %v323 = vpop.permute.xlu0 %322
    %v326 = vadd.f32 %v230, %v321
    %v327 = vadd.f32 %v233, %v323
    %328 = vrot.lane.b32.xlu0 %v239, 95
    %v329 = vpop.permute.xlu0 %328
    %v331 = vadd.f32 %v326, %v329
    %v332 = vadd.f32 %v327, %v329
    %v333 = vxor.u32 %v331, 2147483648
    %v334 = vxor.u32 %v332, 2147483648
    %v335 = vmul.f32 %v333, 1.442695
    %v336 = vpow.pop %v335
    %v337 = vmul.f32 %v334, 1.442695
    %v338 = vpow.pop %v337
    %v339 = vadd.f32 %v336, 1.0
    %v340 = vadd.f32 %v338, 1.0
    %v341 = vrcp.pop %v339
    %v342 = vmul.f32 1.0, %v341
    %v343 = vrcp.pop %v340
    %v344 = vmul.f32 1.0, %v343
    %346 = vrot.lane.b32.xlu0 %v116, 96
    %v347 = vpop.permute.xlu0 %346
    %v348 = vsel %vm136, %v347, 0
    %v350 = vsel %vm136, %v175, 0
    %v352 = vsel %vm136, %v178, 0
    %354 = vmatprep.subr.mxu0 0.0
    %355 = vmatpush1.xpose.msra.mxu0 0.0
    %356 = vmatprep.subr.mxu0 0.0
    %357 = vmatpush1.xpose.msra.mxu0 0.0
    %358 = vmatprep.subr.mxu0 0.0
    %359 = vmatpush1.xpose.msra.mxu0 0.0
    %360 = vmatprep.subr.mxu0 0.0
    %361 = vmatpush1.xpose.msra.mxu0 0.0
    %362 = vmatprep.subr.mxu0 0.0
    %363 = vmatpush1.xpose.msra.mxu0 0.0
    %364 = vmatprep.subr.mxu0 0.0
    %365 = vmatpush1.xpose.msra.mxu0 0.0
    %366 = vmatprep.subr.mxu0 0.0
    %367 = vmatpush1.xpose.msra.mxu0 0.0
    %368 = vmatprep.subr.mxu0 0.0
    %369 = vmatpush1.xpose.msra.mxu0 0.0
    %370 = vmatprep.subr.mxu0 0.0
    %371 = vmatpush1.xpose.msra.mxu0 0.0
    %372 = vmatprep.subr.mxu0 0.0
    %373 = vmatpush1.xpose.msra.mxu0 0.0
    %374 = vmatprep.subr.mxu0 0.0
    %375 = vmatpush1.xpose.msra.mxu0 0.0
    %376 = vmatprep.subr.mxu0 0.0
    %377 = vmatpush1.xpose.msra.mxu0 0.0
    %378 = vmatprep.subr.mxu0 0.0
    %379 = vmatpush1.xpose.msra.mxu0 0.0
    %380 = vmatprep.subr.mxu0 0.0
    %381 = vmatpush1.xpose.msra.mxu0 0.0
    %382 = vmatprep.subr.mxu0 0.0
    %383 = vmatpush1.xpose.msra.mxu0 %v352
    %384 = vmatprep.subr.mxu0 0.0
    %385 = vmatpush1.xpose.msra.mxu0 %v350
    %386 = vmatprep.subr.mxu0 0.0
    %387 = vmatpush2.xpose.msra.mxu0 0.0
    %388 = vmatprep.subr.mxu0 0.0
    %389 = vmatpush2.xpose.msra.mxu0 0.0
    %390 = vmatprep.subr.mxu0 0.0
    %391 = vmatpush2.xpose.msra.mxu0 0.0
    %392 = vmatprep.subr.mxu0 0.0
    %393 = vmatpush2.xpose.msra.mxu0 0.0
    %394 = vmatprep.subr.mxu0 0.0
    %395 = vmatpush2.xpose.msra.mxu0 0.0
    %396 = vmatprep.subr.mxu0 0.0
    %397 = vmatpush2.xpose.msra.mxu0 0.0
    %398 = vmatprep.subr.mxu0 0.0
    %399 = vmatpush2.xpose.msra.mxu0 0.0
    %400 = vmatprep.subr.mxu0 0.0
    %401 = vmatpush2.xpose.msra.mxu0 0.0
    %402 = vmatprep.subr.mxu0 0.0
    %403 = vmatpush2.xpose.msra.mxu0 0.0
    %404 = vmatprep.subr.mxu0 0.0
    %405 = vmatpush2.xpose.msra.mxu0 0.0
    %406 = vmatprep.subr.mxu0 0.0
    %407 = vmatpush2.xpose.msra.mxu0 0.0
    %408 = vmatprep.subr.mxu0 0.0
    %409 = vmatpush2.xpose.msra.mxu0 0.0
    %410 = vmatprep.subr.mxu0 0.0
    %411 = vmatpush2.xpose.msra.mxu0 0.0
    %412 = vmatprep.subr.mxu0 0.0
    %413 = vmatpush2.xpose.msra.mxu0 0.0
    %414 = vmatprep.subr.mxu0 0.0
    %415 = vmatpush2.xpose.msra.mxu0 0.0
    %416 = vmatprep.subr.mxu0 0.0
    %417 = vmatpush2.xpose.msra.mxu0 0.0
    %418 = vmatprep.mubr.f32.mxu0 0.0
    %419 = vmatmul.mubr.f32.gmra.mxu0 %v348
    %v420 = vpop.f32.mrf.mxu0
    %v421 = vadd.f32 0.0, %v420
    %v422 = vpop.f32.mrf.mxu0
    %423 = vdwg.mxu0
    %424 = vset.pattern.permute.xlu0 65
    %425 = vperm.xlu0 %424, %v175
    %v426 = vpop.permute.xlu0 %425
    %428 = vset.pattern.permute.xlu0 65
    %429 = vperm.xlu0 %428, %v178
    %v430 = vpop.permute.xlu0 %429
    %v432 = vlaneseq
    %v433 = vshrl.u32 %v432, 7
    %v434 = vsub.s32 0, %v433
    %v435 = vrot.slane %v421, %v434
    %v436 = vadd.f32 %v426, %v435
    %v437 = vadd.f32 %v430, %v435
    %vm438 = vcmp.gt.f32.partialorder %v436, 0.0
    %vm439 = vcmp.gt.f32.partialorder %v437, 0.0
    %v440 = vmul.f32 %v436, 0.01
    %v441 = vmul.f32 %v437, 0.01
    %v442 = vsel %vm438, %v436, %v440
    %v443 = vsel %vm439, %v437, %v441
    %v444 = vsub.f32 0.0, %v442
    %v445 = vsub.f32 0.0, %v443
    %v446 = vmin.f32 %v444, 80.0
    %v447 = vmin.f32 %v445, 80.0
    %vm448 = vcmp.ne.bf16.partialorder %v112, 0
    %vm449 = vcmp.ne.bf16.partialorder %v113, 0
    %v450 = vmul.f32 %v446, 1.442695
    %v451 = vpow.pop %v450
    %v452 = vmul.f32 %v447, 1.442695
    %v453 = vpow.pop %v452
    %v454 = vsel %vm448, 65537, 0
    %v455 = vsel %vm449, 65537, 0
    %v456 = vunpack.c.l.b16 %v454
    %v457 = vunpack.c.l.b16 %v455
    %vm458 = vcmp.ne.s32.totalorder %v456, 0
    %vm459 = vcmp.ne.s32.totalorder %v457, 0
    %v460 = vsel %vm458, %v451, 0.0
    %v461 = vsel %vm459, %v453, 0.0
    %v462 = vsel %vm191, %v460, 0.0
    %463 = vadd.xlane.f32.xlu0 %v462
    %v464 = vpop.xlane.xlu0 %463
    %v465 = vsel %vm191, %v461, 0.0
    %466 = vadd.xlane.f32.xlu0 %v465
    %v467 = vpop.xlane.xlu0 %466
    %v468 = vadd.f32 %v464, 1e-05
    %v469 = vadd.f32 %v467, 1e-05
    %v470 = vrcp.pop %v468
    %v471 = vrcp.pop %v469
    %v472 = vpack.c.bf16 %v461, %v460
    %v473 = vmul.f32 %v175, %v470
    %v474 = vmul.f32 %v178, %v471
    %v475 = vpack.c.bf16 %v474, %v473
    %v477 = vsel %vm191, %v472, 0
    %479 = vmatprep.subr.bf16.mxu0 0
    %480 = vmatpush1.bf16.msra.mxu0 0
    %481 = vmatprep.subr.bf16.mxu0 0
    %482 = vmatpush1.bf16.msra.mxu0 0
    %483 = vmatprep.subr.bf16.mxu0 0
    %484 = vmatpush1.bf16.msra.mxu0 0
    %485 = vmatprep.subr.bf16.mxu0 0
    %486 = vmatpush1.bf16.msra.mxu0 0
    %487 = vmatprep.subr.bf16.mxu0 0
    %488 = vmatpush1.bf16.msra.mxu0 0
    %489 = vmatprep.subr.bf16.mxu0 0
    %490 = vmatpush1.bf16.msra.mxu0 0
    %491 = vmatprep.subr.bf16.mxu0 0
    %492 = vmatpush1.bf16.msra.mxu0 0
    %493 = vmatprep.subr.bf16.mxu0 0
    %494 = vmatpush1.bf16.msra.mxu0 %v475
    %495 = vmatprep.subr.bf16.mxu0 0
    %496 = vmatpush2.bf16.msra.mxu0 0
    %497 = vmatprep.subr.bf16.mxu0 0
    %498 = vmatpush2.bf16.msra.mxu0 0
    %499 = vmatprep.subr.bf16.mxu0 0
    %500 = vmatpush2.bf16.msra.mxu0 0
    %501 = vmatprep.subr.bf16.mxu0 0
    %502 = vmatpush2.bf16.msra.mxu0 0
    %503 = vmatprep.subr.bf16.mxu0 0
    %504 = vmatpush2.bf16.msra.mxu0 0
    %505 = vmatprep.subr.bf16.mxu0 0
    %506 = vmatpush2.bf16.msra.mxu0 0
    %507 = vmatprep.subr.bf16.mxu0 0
    %508 = vmatpush2.bf16.msra.mxu0 0
    %509 = vmatprep.subr.bf16.mxu0 0
    %510 = vmatpush2.bf16.msra.mxu0 0
    %511 = vmatprep.mubr.bf16.mxu0 0
    %512 = vmatmul.mubr.bf16.gmra.mxu0 %v477
    %v513 = vpop.f32.mrf.mxu0
    %v514 = vadd.f32 0.0, %v513
    %v515 = vpop.f32.mrf.mxu0
    %v516 = vpop.f32.mrf.mxu0
    %v517 = vadd.f32 0.0, %v516
    %v518 = vpop.f32.mrf.mxu0
    %519 = vdwg.mxu0
    %521 = vset.pattern.permute.xlu0 0
    %522 = vperm.xlu0 %521, %v317
    %v523 = vpop.permute.xlu0 %522
    %526 = vset.pattern.permute.xlu0 0
    %527 = vperm.xlu0 %526, %v319
    %v528 = vpop.permute.xlu0 %527
    %v530 = vmul.f32 %v523, %v514
    %v531 = vmul.f32 %v528, %v517
    %533 = vset.pattern.permute.xlu0 32
    %534 = vperm.xlu0 %533, %v342
    %v535 = vpop.permute.xlu0 %534
    %538 = vset.pattern.permute.xlu0 32
    %539 = vperm.xlu0 %538, %v344
    %v540 = vpop.permute.xlu0 %539
    %v542 = vmul.f32 %v535, %v240
    %v543 = vmul.f32 %v540, %v241
    %v544 = vadd.f32 %v530, %v542
    %v545 = vadd.f32 %v531, %v543
    %v546 = vxor.u32 %v544, 2147483648
    %v547 = vxor.u32 %v545, 2147483648
    %v548 = vmul.f32 %v546, 1.442695
    %v549 = vpow.pop %v548
    %v550 = vmul.f32 %v547, 1.442695
    %v551 = vpow.pop %v550
    %v552 = vadd.f32 %v549, 1.0
    %v553 = vadd.f32 %v551, 1.0
    %v554 = vrcp.pop %v552
    %v555 = vmul.f32 1.0, %v554
    %v556 = vrcp.pop %v553
    %v557 = vmul.f32 1.0, %v556
    %v558 = vpack.c.bf16 %v557, %v555
    %v559 = vld [vmem:[#allocation10] sm:$0xf]
    %v560 = vld [vmem:[#allocation10 + $0x4] sm:$0xf]
    %v561 = vld [vmem:[#allocation10 + $0x8] sm:$0xf]
    %v562 = vld [vmem:[#allocation10 + $0xc] sm:$0xf]
    %v567 = vunpack.c.l.b16 %v559
    %v568 = vunpack.c.l.b16 %v560
    %v569 = vunpack.c.l.b16 %v561
    %v570 = vunpack.c.l.b16 %v562
    %v571 = vpack.c.b16 %v568, %v567
    %v572 = vpack.c.b16 %v570, %v569
    %v576 = vsel %vm136, %v558, 0
    %578 = vmatprep.subr.bf16.mxu0 0
    %579 = vmatpush1.bf16.msra.mxu0 0
    %580 = vmatprep.subr.bf16.mxu0 0
    %581 = vmatpush1.bf16.msra.mxu0 0
    %582 = vmatprep.subr.bf16.mxu0 0
    %583 = vmatpush1.bf16.msra.mxu0 0
    %584 = vmatprep.subr.bf16.mxu0 0
    %585 = vmatpush1.bf16.msra.mxu0 0
    %586 = vmatprep.subr.bf16.mxu0 0
    %587 = vmatpush1.bf16.msra.mxu0 0
    %588 = vmatprep.subr.bf16.mxu0 0
    %589 = vmatpush1.bf16.msra.mxu0 0
    %590 = vmatprep.subr.bf16.mxu0 0
    %591 = vmatpush1.bf16.msra.mxu0 %v572
    %592 = vmatprep.subr.bf16.mxu0 0
    %593 = vmatpush1.bf16.msra.mxu0 %v571
    %594 = vmatprep.subr.bf16.mxu0 0
    %595 = vmatpush2.bf16.msra.mxu0 0
    %596 = vmatprep.subr.bf16.mxu0 0
    %597 = vmatpush2.bf16.msra.mxu0 0
    %598 = vmatprep.subr.bf16.mxu0 0
    %599 = vmatpush2.bf16.msra.mxu0 0
    %600 = vmatprep.subr.bf16.mxu0 0
    %601 = vmatpush2.bf16.msra.mxu0 0
    %602 = vmatprep.subr.bf16.mxu0 0
    %603 = vmatpush2.bf16.msra.mxu0 0
    %604 = vmatprep.subr.bf16.mxu0 0
    %605 = vmatpush2.bf16.msra.mxu0 0
    %606 = vmatprep.subr.bf16.mxu0 0
    %607 = vmatpush2.bf16.msra.mxu0 0
    %608 = vmatprep.subr.bf16.mxu0 0
    %609 = vmatpush2.bf16.msra.mxu0 0
    %610 = vmatprep.mubr.bf16.mxu0 0
    %611 = vmatmul.mubr.bf16.gmra.mxu0 %v576
    %v612 = vpop.f32.mrf.mxu0
    %v613 = vadd.f32 0.0, %v612
    %v614 = vpop.f32.mrf.mxu0
    %v615 = vpop.f32.mrf.mxu0
    %v616 = vadd.f32 0.0, %v615
    %v617 = vpop.f32.mrf.mxu0
    %618 = vdwg.mxu0
    %v619 = vpack.c.bf16 %v616, %v613
    %621 = vrot.lane.b32.xlu0 %v619, 96
    %v622 = vpop.permute.xlu0 %621
    %624 = vmatprep.subr.bf16.mxu0 0
    %625 = vmatpush1.bf16.msra.mxu0 0
    %626 = vmatprep.subr.bf16.mxu0 0
    %627 = vmatpush1.bf16.msra.mxu0 0
    %628 = vmatprep.subr.bf16.mxu0 0
    %629 = vmatpush1.bf16.msra.mxu0 0
    %630 = vmatprep.subr.bf16.mxu0 0
    %631 = vmatpush1.bf16.msra.mxu0 0
    %632 = vmatprep.subr.bf16.mxu0 0
    %633 = vmatpush1.bf16.msra.mxu0 0
    %634 = vmatprep.subr.bf16.mxu0 0
    %635 = vmatpush1.bf16.msra.mxu0 0
    %636 = vmatprep.subr.bf16.mxu0 0
    %637 = vmatpush1.bf16.msra.mxu0 0
    %638 = vmatprep.subr.bf16.mxu0 0
    %639 = vmatpush1.bf16.msra.mxu0 %v622
    %640 = vmatprep.subr.bf16.mxu0 0
    %641 = vmatpush2.bf16.msra.mxu0 0
    %642 = vmatprep.subr.bf16.mxu0 0
    %643 = vmatpush2.bf16.msra.mxu0 0
    %644 = vmatprep.subr.bf16.mxu0 0
    %645 = vmatpush2.bf16.msra.mxu0 0
    %646 = vmatprep.subr.bf16.mxu0 0
    %647 = vmatpush2.bf16.msra.mxu0 0
    %648 = vmatprep.subr.bf16.mxu0 0
    %649 = vmatpush2.bf16.msra.mxu0 0
    %650 = vmatprep.subr.bf16.mxu0 0
    %651 = vmatpush2.bf16.msra.mxu0 0
    %652 = vmatprep.subr.bf16.mxu0 0
    %653 = vmatpush2.bf16.msra.mxu0 0
    %654 = vmatprep.subr.bf16.mxu0 0
    %655 = vmatpush2.bf16.msra.mxu0 0
    %656 = vmatprep.mubr.bf16.mxu0 0
    %657 = vmatmul.mubr.bf16.gmra.mxu0 %v193
    %v658 = vpop.f32.mrf.mxu0
    %v659 = vadd.f32 0.0, %v658
    %v660 = vpop.f32.mrf.mxu0
    %v661 = vpop.f32.mrf.mxu0
    %v662 = vadd.f32 0.0, %v661
    %v663 = vpop.f32.mrf.mxu0
    %664 = vdwg.mxu0
    %v665 = vlaneseq
    %v666 = vshrl.u32 %v665, 7
    %v667 = vsub.s32 1, %v666
    %v668 = vrot.slane %v116, %v667
    %v669 = vadd.f32 %v659, %v668
    %v670 = vadd.f32 %v662, %v668
    %671 = vrot.lane.b32.xlu0 %v619, 62
    %v672 = vpop.permute.xlu0 %671
    %676 = vrot.lane.b32.xlu0 %v613, 61
    %v677 = vpop.permute.xlu0 %676
    %678 = vrot.lane.b32.xlu0 %v616, 61
    %v679 = vpop.permute.xlu0 %678
    %682 = vmatprep.subr.bf16.mxu0 0
    %683 = vmatpush1.bf16.msra.mxu0 0
    %684 = vmatprep.subr.bf16.mxu0 0
    %685 = vmatpush1.bf16.msra.mxu0 0
    %686 = vmatprep.subr.bf16.mxu0 0
    %687 = vmatpush1.bf16.msra.mxu0 0
    %688 = vmatprep.subr.bf16.mxu0 0
    %689 = vmatpush1.bf16.msra.mxu0 0
    %690 = vmatprep.subr.bf16.mxu0 0
    %691 = vmatpush1.bf16.msra.mxu0 0
    %692 = vmatprep.subr.bf16.mxu0 0
    %693 = vmatpush1.bf16.msra.mxu0 0
    %694 = vmatprep.subr.bf16.mxu0 0
    %695 = vmatpush1.bf16.msra.mxu0 0
    %696 = vmatprep.subr.bf16.mxu0 0
    %697 = vmatpush1.bf16.msra.mxu0 %v672
    %698 = vmatprep.subr.bf16.mxu0 0
    %699 = vmatpush2.bf16.msra.mxu0 0
    %700 = vmatprep.subr.bf16.mxu0 0
    %701 = vmatpush2.bf16.msra.mxu0 0
    %702 = vmatprep.subr.bf16.mxu0 0
    %703 = vmatpush2.bf16.msra.mxu0 0
    %704 = vmatprep.subr.bf16.mxu0 0
    %705 = vmatpush2.bf16.msra.mxu0 0
    %706 = vmatprep.subr.bf16.mxu0 0
    %707 = vmatpush2.bf16.msra.mxu0 0
    %708 = vmatprep.subr.bf16.mxu0 0
    %709 = vmatpush2.bf16.msra.mxu0 0
    %710 = vmatprep.subr.bf16.mxu0 0
    %711 = vmatpush2.bf16.msra.mxu0 0
    %712 = vmatprep.subr.bf16.mxu0 0
    %713 = vmatpush2.bf16.msra.mxu0 0
    %714 = vmatprep.mubr.bf16.mxu0 0
    %715 = vmatmul.mubr.bf16.gmra.mxu0 %v259
    %v716 = vpop.f32.mrf.mxu0
    %v717 = vadd.f32 %v677, %v716
    %v718 = vpop.f32.mrf.mxu0
    %v719 = vpop.f32.mrf.mxu0
    %v720 = vadd.f32 %v679, %v719
    %v721 = vpop.f32.mrf.mxu0
    %722 = vdwg.mxu0
    %724 = vrot.lane.b32.xlu0 %v668, 64
    %v725 = vpop.permute.xlu0 %724
    %v727 = vadd.f32 %v717, %v725
    %v728 = vadd.f32 %v720, %v725
    %v729 = vxor.u32 %v727, 2147483648
    %v730 = vxor.u32 %v728, 2147483648
    %v731 = vmul.f32 %v729, 1.442695
    %v732 = vpow.pop %v731
    %v733 = vmul.f32 %v730, 1.442695
    %v734 = vpow.pop %v733
    %v735 = vadd.f32 %v732, 1.0
    %v736 = vadd.f32 %v734, 1.0
    %v737 = vrcp.pop %v735
    %v738 = vmul.f32 1.0, %v737
    %v739 = vrcp.pop %v736
    %v740 = vmul.f32 1.0, %v739
    %741 = vrot.lane.b32.xlu0 %v613, 92
    %v742 = vpop.permute.xlu0 %741
    %743 = vrot.lane.b32.xlu0 %v616, 92
    %v744 = vpop.permute.xlu0 %743
    %v747 = vadd.f32 %v659, %v742
    %v748 = vadd.f32 %v662, %v744
    %749 = vrot.lane.b32.xlu0 %v668, 95
    %v750 = vpop.permute.xlu0 %749
    %v752 = vadd.f32 %v747, %v750
    %v753 = vadd.f32 %v748, %v750
    %v754 = vxor.u32 %v752, 2147483648
    %v755 = vxor.u32 %v753, 2147483648
    %v756 = vmul.f32 %v754, 1.442695
    %v757 = vpow.pop %v756
    %v758 = vmul.f32 %v755, 1.442695
    %v759 = vpow.pop %v758
    %v760 = vadd.f32 %v757, 1.0
    %v761 = vadd.f32 %v759, 1.0
    %v762 = vrcp.pop %v760
    %v763 = vmul.f32 1.0, %v762
    %v764 = vrcp.pop %v761
    %v765 = vmul.f32 1.0, %v764
    %v766 = vrot.slane %v116, 1
    %767 = vrot.lane.b32.xlu0 %v766, 96
    %v768 = vpop.permute.xlu0 %767
    %v769 = vsel %vm136, %v768, 0
    %v771 = vsel %vm136, %v613, 0
    %v773 = vsel %vm136, %v616, 0
    %775 = vmatprep.subr.mxu0 0.0
    %776 = vmatpush1.xpose.msra.mxu0 0.0
    %777 = vmatprep.subr.mxu0 0.0
    %778 = vmatpush1.xpose.msra.mxu0 0.0
    %779 = vmatprep.subr.mxu0 0.0
    %780 = vmatpush1.xpose.msra.mxu0 0.0
    %781 = vmatprep.subr.mxu0 0.0
    %782 = vmatpush1.xpose.msra.mxu0 0.0
    %783 = vmatprep.subr.mxu0 0.0
    %784 = vmatpush1.xpose.msra.mxu0 0.0
    %785 = vmatprep.subr.mxu0 0.0
    %786 = vmatpush1.xpose.msra.mxu0 0.0
    %787 = vmatprep.subr.mxu0 0.0
    %788 = vmatpush1.xpose.msra.mxu0 0.0
    %789 = vmatprep.subr.mxu0 0.0
    %790 = vmatpush1.xpose.msra.mxu0 0.0
    %791 = vmatprep.subr.mxu0 0.0
    %792 = vmatpush1.xpose.msra.mxu0 0.0
    %793 = vmatprep.subr.mxu0 0.0
    %794 = vmatpush1.xpose.msra.mxu0 0.0
    %795 = vmatprep.subr.mxu0 0.0
    %796 = vmatpush1.xpose.msra.mxu0 0.0
    %797 = vmatprep.subr.mxu0 0.0
    %798 = vmatpush1.xpose.msra.mxu0 0.0
    %799 = vmatprep.subr.mxu0 0.0
    %800 = vmatpush1.xpose.msra.mxu0 0.0
    %801 = vmatprep.subr.mxu0 0.0
    %802 = vmatpush1.xpose.msra.mxu0 0.0
    %803 = vmatprep.subr.mxu0 0.0
    %804 = vmatpush1.xpose.msra.mxu0 %v773
    %805 = vmatprep.subr.mxu0 0.0
    %806 = vmatpush1.xpose.msra.mxu0 %v771
    %807 = vmatprep.subr.mxu0 0.0
    %808 = vmatpush2.xpose.msra.mxu0 0.0
    %809 = vmatprep.subr.mxu0 0.0
    %810 = vmatpush2.xpose.msra.mxu0 0.0
    %811 = vmatprep.subr.mxu0 0.0
    %812 = vmatpush2.xpose.msra.mxu0 0.0
    %813 = vmatprep.subr.mxu0 0.0
    %814 = vmatpush2.xpose.msra.mxu0 0.0
    %815 = vmatprep.subr.mxu0 0.0
    %816 = vmatpush2.xpose.msra.mxu0 0.0
    %817 = vmatprep.subr.mxu0 0.0
    %818 = vmatpush2.xpose.msra.mxu0 0.0
    %819 = vmatprep.subr.mxu0 0.0
    %820 = vmatpush2.xpose.msra.mxu0 0.0
    %821 = vmatprep.subr.mxu0 0.0
    %822 = vmatpush2.xpose.msra.mxu0 0.0
    %823 = vmatprep.subr.mxu0 0.0
    %824 = vmatpush2.xpose.msra.mxu0 0.0
    %825 = vmatprep.subr.mxu0 0.0
    %826 = vmatpush2.xpose.msra.mxu0 0.0
    %827 = vmatprep.subr.mxu0 0.0
    %828 = vmatpush2.xpose.msra.mxu0 0.0
    %829 = vmatprep.subr.mxu0 0.0
    %830 = vmatpush2.xpose.msra.mxu0 0.0
    %831 = vmatprep.subr.mxu0 0.0
    %832 = vmatpush2.xpose.msra.mxu0 0.0
    %833 = vmatprep.subr.mxu0 0.0
    %834 = vmatpush2.xpose.msra.mxu0 0.0
    %835 = vmatprep.subr.mxu0 0.0
    %836 = vmatpush2.xpose.msra.mxu0 0.0
    %837 = vmatprep.subr.mxu0 0.0
    %838 = vmatpush2.xpose.msra.mxu0 0.0
    %839 = vmatprep.mubr.f32.mxu0 0.0
    %840 = vmatmul.mubr.f32.gmra.mxu0 %v769
    %v841 = vpop.f32.mrf.mxu0
    %v842 = vadd.f32 0.0, %v841
    %v843 = vpop.f32.mrf.mxu0
    %844 = vdwg.mxu0
    %845 = vset.pattern.permute.xlu0 65
    %846 = vperm.xlu0 %845, %v613
    %v847 = vpop.permute.xlu0 %846
    %849 = vset.pattern.permute.xlu0 65
    %850 = vperm.xlu0 %849, %v616
    %v851 = vpop.permute.xlu0 %850
    %v853 = vlaneseq
    %v854 = vshrl.u32 %v853, 7
    %v855 = vsub.s32 0, %v854
    %v856 = vrot.slane %v842, %v855
    %v857 = vadd.f32 %v847, %v856
    %v858 = vadd.f32 %v851, %v856
    %vm859 = vcmp.gt.f32.partialorder %v857, 0.0
    %vm860 = vcmp.gt.f32.partialorder %v858, 0.0
    %v861 = vmul.f32 %v857, 0.01
    %v862 = vmul.f32 %v858, 0.01
    %v863 = vsel %vm859, %v857, %v861
    %v864 = vsel %vm860, %v858, %v862
    %v865 = vsub.f32 0.0, %v863
    %v866 = vsub.f32 0.0, %v864
    %v867 = vmin.f32 %v865, 80.0
    %v868 = vmin.f32 %v866, 80.0
    %v869 = vmul.f32 %v867, 1.442695
    %v870 = vpow.pop %v869
    %v871 = vmul.f32 %v868, 1.442695
    %v872 = vpow.pop %v871
    %v873 = vsel %vm458, %v870, 0.0
    %v874 = vsel %vm459, %v872, 0.0
    %v875 = vsel %vm191, %v873, 0.0
    %876 = vadd.xlane.f32.xlu0 %v875
    %v877 = vpop.xlane.xlu0 %876
    %v878 = vsel %vm191, %v874, 0.0
    %879 = vadd.xlane.f32.xlu0 %v878
    %v880 = vpop.xlane.xlu0 %879
    %v881 = vadd.f32 %v877, 1e-05
    %v882 = vadd.f32 %v880, 1e-05
    %v883 = vrcp.pop %v881
    %v884 = vrcp.pop %v882
    %v885 = vpack.c.bf16 %v874, %v873
    %v886 = vmul.f32 %v613, %v883
    %v887 = vmul.f32 %v616, %v884
    %v888 = vpack.c.bf16 %v887, %v886
    %v890 = vsel %vm191, %v885, 0
    %892 = vmatprep.subr.bf16.mxu0 0
    %893 = vmatpush1.bf16.msra.mxu0 0
    %894 = vmatprep.subr.bf16.mxu0 0
    %895 = vmatpush1.bf16.msra.mxu0 0
    %896 = vmatprep.subr.bf16.mxu0 0
    %897 = vmatpush1.bf16.msra.mxu0 0
    %898 = vmatprep.subr.bf16.mxu0 0
    %899 = vmatpush1.bf16.msra.mxu0 0
    %900 = vmatprep.subr.bf16.mxu0 0
    %901 = vmatpush1.bf16.msra.mxu0 0
    %902 = vmatprep.subr.bf16.mxu0 0
    %903 = vmatpush1.bf16.msra.mxu0 0
    %904 = vmatprep.subr.bf16.mxu0 0
    %905 = vmatpush1.bf16.msra.mxu0 0
    %906 = vmatprep.subr.bf16.mxu0 0
    %907 = vmatpush1.bf16.msra.mxu0 %v888
    %908 = vmatprep.subr.bf16.mxu0 0
    %909 = vmatpush2.bf16.msra.mxu0 0
    %910 = vmatprep.subr.bf16.mxu0 0
    %911 = vmatpush2.bf16.msra.mxu0 0
    %912 = vmatprep.subr.bf16.mxu0 0
    %913 = vmatpush2.bf16.msra.mxu0 0
    %914 = vmatprep.subr.bf16.mxu0 0
    %915 = vmatpush2.bf16.msra.mxu0 0
    %916 = vmatprep.subr.bf16.mxu0 0
    %917 = vmatpush2.bf16.msra.mxu0 0
    %918 = vmatprep.subr.bf16.mxu0 0
    %919 = vmatpush2.bf16.msra.mxu0 0
    %920 = vmatprep.subr.bf16.mxu0 0
    %921 = vmatpush2.bf16.msra.mxu0 0
    %922 = vmatprep.subr.bf16.mxu0 0
    %923 = vmatpush2.bf16.msra.mxu0 0
    %924 = vmatprep.mubr.bf16.mxu0 0
    %925 = vmatmul.mubr.bf16.gmra.mxu0 %v890
    %v926 = vpop.f32.mrf.mxu0
    %v927 = vadd.f32 0.0, %v926
    %v928 = vpop.f32.mrf.mxu0
    %v929 = vpop.f32.mrf.mxu0
    %v930 = vadd.f32 0.0, %v929
    %v931 = vpop.f32.mrf.mxu0
    %932 = vdwg.mxu0
    %934 = vset.pattern.permute.xlu0 0
    %935 = vperm.xlu0 %934, %v738
    %v936 = vpop.permute.xlu0 %935
    %939 = vset.pattern.permute.xlu0 0
    %940 = vperm.xlu0 %939, %v740
    %v941 = vpop.permute.xlu0 %940
    %v943 = vmul.f32 %v936, %v927
    %v944 = vmul.f32 %v941, %v930
    %946 = vset.pattern.permute.xlu0 32
    %947 = vperm.xlu0 %946, %v763
    %v948 = vpop.permute.xlu0 %947
    %951 = vset.pattern.permute.xlu0 32
    %952 = vperm.xlu0 %951, %v765
    %v953 = vpop.permute.xlu0 %952
    %v955 = vmul.f32 %v948, %v669
    %v956 = vmul.f32 %v953, %v670
    %v957 = vadd.f32 %v943, %v955
    %v958 = vadd.f32 %v944, %v956
    %v959 = vxor.u32 %v957, 2147483648
    %v960 = vxor.u32 %v958, 2147483648
    %v961 = vmul.f32 %v959, 1.442695
    %v962 = vpow.pop %v961
    %v963 = vmul.f32 %v960, 1.442695
    %v964 = vpow.pop %v963
    %v965 = vadd.f32 %v962, 1.0
    %v966 = vadd.f32 %v964, 1.0
    %v967 = vrcp.pop %v965
    %v968 = vmul.f32 1.0, %v967
    %v969 = vrcp.pop %v966
    %v970 = vmul.f32 1.0, %v969
    %v971 = vmax.f32 %v968, 0.0
    %v972 = vmax.f32 %v970, 0.0
    %v973 = vld [vmem:[#allocation11] sm:$0xff]
    %v974 = vld [vmem:[#allocation11 + $0x8] sm:$0xff]
    %v975 = vmul.f32 %v971, %v973
    %v976 = vmul.f32 %v972, %v974
    %977 = vst.msk [vmem:[#allocation13] sm:$0xff] %vm136, %v975
    %978 = vst.msk [vmem:[#allocation13 + $0x8] sm:$0xff] %vm136, %v976
    // Predicated region
    $region54: #{tpu_custom_call.1} parent=1 // pred_check
      _
    $region55: #{tpu_custom_call.1} parent=1 // pred_check_branch
      %980 = sbr.rel (0) target = $region57
    $region56: #{tpu_custom_call.1} parent=1 // pred_region
      %s982 = ssub.s32 256, 256
      %983 = vsyncadd [#allocation4], %s982
      %s984 = sshll.u32 [#allocation13], 4
      %s985 = int_to_ptr.vmem [resolvable:$true] %s984
      %990 = dma.vmem_to_hbm [thread:$0]  %s985, 256, %s7, [#allocation4], 128, 128, 8
    $region57: #{tpu_custom_call.1} parent=1 // pred_fallthru
      _
    // Predicated region
    $region58: #{tpu_custom_call.1} parent=1 // pred_check
      _
    $region59: #{tpu_custom_call.1} parent=1 // pred_check_branch
      %992 = sbr.rel (0) target = $region61
    $region60: #{tpu_custom_call.1} parent=1 // pred_region
      %993 = dma.done [#allocation4], 256
    $region61: #{tpu_custom_call.1} parent=1 // pred_fallthru
      _
    %994 = vsyncpa [#allocation3], 1
    %995 = vsyncpa [#allocation6], 1
    %996 = vsyncpa [#allocation9], 1
    %997 = vsyncpa [#allocation12], 1
    %998 = vsyncpa [#allocation4], 1

</llo_original>
